<compile_context>
chip_gen: v7x
topology: tpu7x:2x2x1
jax: 0.10.0
libtpu: 0.0.40
codegen_flags: <defaults>
</compile_context>

<pallas_src>
import functools

import jax
import jax.numpy as jnp
from jax.experimental import pallas as pl
from jax.experimental.pallas import tpu as pltpu


# --------------------------------------------------------------------------
# Kernel
# --------------------------------------------------------------------------
def _attention_kernel(h_enc_ref, h_dec_ref,
                      w_psi_t_ref, b_psi_ref, w_phi_t_ref, b_phi_ref,
                      out_ref, *, t_enc_valid):
    he = h_enc_ref[...]                        # (Bb, Tep, Hp)  compute dtype (bf16)
    hd = h_dec_ref[...]                        # (Bb, Tdp, Hp)
    Bb, Tep, Hp = he.shape
    Tdp = hd.shape[1]
    Ap = w_psi_t_ref.shape[1]
    cd = he.dtype

    w_psi_t = w_psi_t_ref[...]                 # (Hp, Ap)  pre-transposed, compute dtype
    w_phi_t = w_phi_t_ref[...]                 # (Hp, Ap)
    b_psi = b_psi_ref[...]                     # (1, Ap)   f32
    b_phi = b_phi_ref[...]                     # (1, Ap)

    # Projections: layout-preserving flatten (T dims are multiples of 8,
    # Hp/Ap multiples of 128), one fat MXU matmul each, f32 accumulation.
    psi = jnp.dot(he.reshape(Bb * Tep, Hp), w_psi_t,
                  preferred_element_type=jnp.float32) + b_psi      # (Bb*Tep, Ap) f32
    phi = jnp.dot(hd.reshape(Bb * Tdp, Hp), w_phi_t,
                  preferred_element_type=jnp.float32) + b_phi      # (Bb*Tdp, Ap) f32
    psi = psi.reshape(Bb, Tep, Ap).astype(cd)
    phi = phi.reshape(Bb, Tdp, Ap).astype(cd)

    # Energies directly in (Bb, T_dec, T_enc) layout -- no transposes.
    e = jnp.einsum('bsa,bta->bst', phi, psi,
                   preferred_element_type=jnp.float32)             # (Bb, Tdp, Tep) f32

    if t_enc_valid != Tep:
        # Mask padded encoder timesteps so exp(pad) cannot corrupt the denom.
        t_idx = jax.lax.broadcasted_iota(jnp.int32, e.shape, dimension=2)
        e = jnp.where(t_idx < t_enc_valid, e, jnp.float32(-1e30))

    # Softmax over encoder time (last axis), all f32 (VPU/EUP).
    e_max = jnp.max(e, axis=-1, keepdims=True)
    p = jnp.exp(e - e_max)
    denom = jnp.sum(p, axis=-1, keepdims=True)                     # (Bb, Tdp, 1), >= 1

    # Context; fold 1/denom into the epilogue (approx EUP reciprocal is
    # numerically safe because denom >= 1 after max subtraction).
    c = jnp.einsum('bst,bth->bsh', p.astype(cd), he,
                   preferred_element_type=jnp.float32)             # (Bb, Tdp, Hp) f32
    c = c * pl.reciprocal(denom, approx=True)
    out_ref[...] = c.astype(out_ref.dtype)


# --------------------------------------------------------------------------
# Generation-aware VMEM budgeting + block selection
# --------------------------------------------------------------------------
def _round_up(x, m):
    return ((x + m - 1) // m) * m


def _vmem_limit_and_budget():
    """Scoped-VMEM limit and the block-sizing budget, derived from the chip."""
    phys = None
    try:
        info = pltpu.get_tpu_info()
        phys = getattr(info, "vmem_capacity_bytes", None)
    except Exception:
        phys = None
    if not phys:
        phys = 64 * 1024 * 1024          # conservative (v7x-class); v5e/v6e have 128 MiB
    # ~48 MiB on a 64 MiB chip, ~96 MiB on a 128 MiB chip.
    limit = max(32 << 20, min(int(phys * 0.75), phys - (16 << 20)))
    budget = int(limit * 0.85)           # headroom for compiler temporaries
    return limit, budget


def _block_bytes(bb, tep, tdp, hp, ap, in_bytes, out_bytes):
    """Approximate per-grid-step VMEM footprint for a batch block of size bb."""
    pipelined = 2 * bb * (tep * hp * in_bytes      # h_enc tile (double-buffered)
                          + tdp * hp * in_bytes    # h_dec tile
                          + tdp * hp * out_bytes)  # output tile
    weights = 2 * (2 * hp * ap * in_bytes + 2 * ap * 4)   # constant, still 2 buffers
    interm = bb * 4 * (tep * ap                    # psi (f32)
                       + tdp * ap                  # phi
                       + 2 * tdp * tep             # e and p
                       + tdp * hp)                 # context accumulator
    return pipelined + weights + interm


def _pick_batch_block(batch, tep, tdp, hp, ap, in_bytes, out_bytes, budget):
    divisors = [d for d in range(1, batch + 1) if batch % d == 0]
    fitting = [d for d in divisors
               if _block_bytes(d, tep, tdp, hp, ap, in_bytes, out_bytes) <= budget]
    if not fitting:
        return 1
    # Prefer >=4 grid steps (>=2 per TensorCore on v7x megacore) so the
    # BlockSpec pipeline can overlap DMA with compute; then >=2; then largest.
    for min_steps in (4, 2, 1):
        cands = [d for d in fitting if batch // d >= min_steps]
        if cands:
            return max(cands)
    return max(fitting)


# --------------------------------------------------------------------------
# Wrapper
# --------------------------------------------------------------------------
def attention_forward(h_enc, h_dec, w_psi, b_psi, w_phi, b_phi,
                      *, batch_block=None, compute_dtype=jnp.bfloat16):
    """h_enc: (B, T_enc, H), h_dec: (T_dec, B, H)  ->  (B, T_dec, H)."""
    B, T_enc, H = h_enc.shape
    T_dec = h_dec.shape[0]
    A = w_psi.shape[0]
    out_dtype = h_enc.dtype

    # ---- pure-XLA layout prep, executed once (not per grid step) ----------
    # Pad H/A to lane multiples (128) and T dims to sublane multiples (8).
    Hp = _round_up(H, 128)
    Ap = _round_up(A, 128)
    Tep = _round_up(T_enc, 8)
    Tdp = _round_up(T_dec, 8)

    h_dec_bf = jnp.transpose(h_dec, (1, 0, 2))                          # (B, T_dec, H)
    h_enc_p = jnp.pad(h_enc, ((0, 0), (0, Tep - T_enc), (0, Hp - H)))
    h_dec_p = jnp.pad(h_dec_bf, ((0, 0), (0, Tdp - T_dec), (0, Hp - H)))
    w_psi_t = jnp.pad(jnp.transpose(w_psi), ((0, Hp - H), (0, Ap - A)))  # (Hp, Ap)
    w_phi_t = jnp.pad(jnp.transpose(w_phi), ((0, Hp - H), (0, Ap - A)))
    b_psi_p = jnp.pad(b_psi, ((0, Ap - A),)).reshape(1, Ap)
    b_phi_p = jnp.pad(b_phi, ((0, Ap - A),)).reshape(1, Ap)

    # bf16 MXU operands (halves HBM/VMEM traffic); biases stay f32.
    h_enc_p = h_enc_p.astype(compute_dtype)
    h_dec_p = h_dec_p.astype(compute_dtype)
    w_psi_t = w_psi_t.astype(compute_dtype)
    w_phi_t = w_phi_t.astype(compute_dtype)
    b_psi_p = b_psi_p.astype(jnp.float32)
    b_phi_p = b_phi_p.astype(jnp.float32)

    in_bytes = jnp.dtype(compute_dtype).itemsize
    out_bytes = jnp.dtype(out_dtype).itemsize
    vmem_limit, vmem_budget = _vmem_limit_and_budget()

    if batch_block is None:
        batch_block = _pick_batch_block(B, Tep, Tdp, Hp, Ap,
                                        in_bytes, out_bytes, vmem_budget)
    assert B % batch_block == 0, "batch_block must divide B"
    grid = (B // batch_block,)

    kernel = functools.partial(_attention_kernel, t_enc_valid=T_enc)

    grid_spec = pltpu.PrefetchScalarGridSpec(
        num_scalar_prefetch=0,
        grid=grid,
        in_specs=[
            pl.BlockSpec((batch_block, Tep, Hp), lambda i: (i, 0, 0)),   # h_enc
            pl.BlockSpec((batch_block, Tdp, Hp), lambda i: (i, 0, 0)),   # h_dec (batch-first)
            pl.BlockSpec((Hp, Ap), lambda i: (0, 0)),                    # W_psi^T (constant)
            pl.BlockSpec((1, Ap), lambda i: (0, 0)),                     # b_psi
            pl.BlockSpec((Hp, Ap), lambda i: (0, 0)),                    # W_phi^T (constant)
            pl.BlockSpec((1, Ap), lambda i: (0, 0)),                     # b_phi
        ],
        out_specs=pl.BlockSpec((batch_block, Tdp, Hp), lambda i: (i, 0, 0)),
    )

    out_padded = pl.pallas_call(
        kernel,
        out_shape=jax.ShapeDtypeStruct((B, Tdp, Hp), out_dtype),
        grid_spec=grid_spec,
        compiler_params=pltpu.CompilerParams(
            dimension_semantics=("parallel",),
            vmem_limit_bytes=vmem_limit),
    )(h_enc_p, h_dec_p, w_psi_t, b_psi_p, w_phi_t, b_phi_p)

    # Strip the lane/sublane padding (pure XLA glue).
    return out_padded[:, :T_dec, :H]


# --------------------------------------------------------------------------
# Reference (mirrors the PyTorch op order; optionally matched bf16 operands)
# --------------------------------------------------------------------------
def _reference(h_enc, h_dec, w_psi, b_psi, w_phi, b_phi,
               compute_dtype=jnp.float32):
    cd = compute_dtype
    psi = jnp.einsum('bth,ah->bta', h_enc.astype(cd), w_psi.astype(cd),
                     preferred_element_type=jnp.float32) + b_psi     # (B, T_enc, A)
    phi = jnp.einsum('sbh,ah->sba', h_dec.astype(cd), w_phi.astype(cd),
                     preferred_element_type=jnp.float32) + b_phi     # (T_dec, B, A)
    e = jnp.einsum('bta,sba->bts', psi.astype(cd), phi.astype(cd),
                   preferred_element_type=jnp.float32)               # (B, T_enc, T_dec)
    a = jax.nn.softmax(e, axis=1)                                    # softmax over T_enc
    c = jnp.einsum('bth,bts->bsh', h_enc.astype(cd), a.astype(cd),
                   preferred_element_type=jnp.float32)               # (B, T_dec, H)
    return c


if __name__ == "__main__":
    B, T_enc, T_dec, H, A = 2, 16, 8, 32, 16

    key = jax.random.PRNGKey(0)
    k1, k2, k3, k4, k5, k6 = jax.random.split(key, 6)

    h_enc = jax.random.normal(k1, (B, T_enc, H), dtype=jnp.float32)
    h_dec = jax.random.normal(k2, (T_dec, B, H), dtype=jnp.float32)

    # nn.Linear(H, A) convention: weight (A, H), bias (A,)
    w_psi = jax.random.normal(k3, (A, H), dtype=jnp.float32) * 0.1
    b_psi = jax.random.normal(k4, (A,), dtype=jnp.float32) * 0.1
    w_phi = jax.random.normal(k5, (A, H), dtype=jnp.float32) * 0.1
    b_phi = jax.random.normal(k6, (A,), dtype=jnp.float32) * 0.1

    out = attention_forward(h_enc, h_dec, w_psi, b_psi, w_phi, b_phi)
    out = jax.block_until_ready(out)
    assert out.shape == (B, T_dec, H)

    # Matched-precision reference: same bf16 MXU operands / f32 accumulation /
    # f32 softmax as the kernel, so the tolerance only has to absorb
    # accumulation-order differences and the approximate EUP reciprocal.
    ref = _reference(h_enc, h_dec, w_psi, b_psi, w_phi, b_phi,
                     compute_dtype=jnp.bfloat16)
    assert jnp.allclose(out.astype(jnp.float32), ref, atol=1e-2, rtol=1e-2), \
        "mismatch vs matched-precision reference"

    print("KERNEL_OK")
</pallas_src>

<mosaic_0001>
module attributes {stable_mosaic.version = 11 : i64} {
  func.func @_attention_kernel(%arg0: i32, %arg1: memref<1x16x128xbf16, #tpu.memory_space<vmem>>, %arg2: memref<1x8x128xbf16, #tpu.memory_space<vmem>>, %arg3: memref<128x128xbf16, #tpu.memory_space<vmem>>, %arg4: memref<1x128xf32, #tpu.memory_space<vmem>>, %arg5: memref<128x128xbf16, #tpu.memory_space<vmem>>, %arg6: memref<1x128xf32, #tpu.memory_space<vmem>>, %arg7: memref<1x8x128xf32, #tpu.memory_space<vmem>>) attributes {dimension_semantics = [#tpu.dimension_semantics<parallel>], iteration_bounds = array<i64: 2>, scalar_prefetch = 0 : i64, scratch_operands = 0 : i64, tpu.core_type = #tpu.core_type<tc>, window_params = [{transform_indices = @transform_0, window_bounds = array<i64: 1, 16, 128>}, {transform_indices = @transform_1, window_bounds = array<i64: 1, 8, 128>}, {pipeline_mode = #tpu.pipeline_mode<synchronous>, transform_indices = @transform_2, window_bounds = array<i64: 128, 128>}, {pipeline_mode = #tpu.pipeline_mode<synchronous>, transform_indices = @transform_3, window_bounds = array<i64: 1, 128>}, {pipeline_mode = #tpu.pipeline_mode<synchronous>, transform_indices = @transform_4, window_bounds = array<i64: 128, 128>}, {pipeline_mode = #tpu.pipeline_mode<synchronous>, transform_indices = @transform_5, window_bounds = array<i64: 1, 128>}, {transform_indices = @transform_6, window_bounds = array<i64: 1, 8, 128>}]} {
    %c0 = arith.constant 0 : index
    %c0_0 = arith.constant 0 : index
    %c0_1 = arith.constant 0 : index
    %0 = vector.load %arg1[%c0, %c0_0, %c0_1] : memref<1x16x128xbf16, #tpu.memory_space<vmem>>, vector<1x16x128xbf16>
    %c0_2 = arith.constant 0 : index
    %c0_3 = arith.constant 0 : index
    %c0_4 = arith.constant 0 : index
    %1 = vector.load %arg2[%c0_2, %c0_3, %c0_4] : memref<1x8x128xbf16, #tpu.memory_space<vmem>>, vector<1x8x128xbf16>
    %c0_5 = arith.constant 0 : index
    %c0_6 = arith.constant 0 : index
    %2 = vector.load %arg3[%c0_5, %c0_6] : memref<128x128xbf16, #tpu.memory_space<vmem>>, vector<128x128xbf16>
    %c0_7 = arith.constant 0 : index
    %c0_8 = arith.constant 0 : index
    %3 = vector.load %arg5[%c0_7, %c0_8] : memref<128x128xbf16, #tpu.memory_space<vmem>>, vector<128x128xbf16>
    %c0_9 = arith.constant 0 : index
    %c0_10 = arith.constant 0 : index
    %4 = vector.load %arg4[%c0_9, %c0_10] : memref<1x128xf32, #tpu.memory_space<vmem>>, vector<1x128xf32>
    %c0_11 = arith.constant 0 : index
    %c0_12 = arith.constant 0 : index
    %5 = vector.load %arg6[%c0_11, %c0_12] : memref<1x128xf32, #tpu.memory_space<vmem>>, vector<1x128xf32>
    %6 = vector.shape_cast %0 : vector<1x16x128xbf16> to vector<16x128xbf16>
    %cst = arith.constant dense<0.000000e+00> : vector<16x128xf32>
    %7 = tpu.matmul %6, %2, %cst {dimension_numbers = #tpu.dot_dimension_numbers<[1], [0], [0], [1], [0, 0, 1, 1], [], []>} : vector<16x128xbf16>, vector<128x128xbf16>, vector<16x128xf32> -> vector<16x128xf32>
    %8 = vector.broadcast %4 : vector<1x128xf32> to vector<16x128xf32>
    %9 = arith.addf %7, %8 : vector<16x128xf32>
    %10 = vector.shape_cast %1 : vector<1x8x128xbf16> to vector<8x128xbf16>
    %cst_13 = arith.constant dense<0.000000e+00> : vector<8x128xf32>
    %11 = tpu.matmul %10, %3, %cst_13 {dimension_numbers = #tpu.dot_dimension_numbers<[1], [0], [0], [1], [0, 0, 1, 1], [], []>} : vector<8x128xbf16>, vector<128x128xbf16>, vector<8x128xf32> -> vector<8x128xf32>
    %12 = vector.broadcast %5 : vector<1x128xf32> to vector<8x128xf32>
    %13 = arith.addf %11, %12 : vector<8x128xf32>
    %14 = vector.shape_cast %9 : vector<16x128xf32> to vector<1x16x128xf32>
    %15 = arith.truncf %14 : vector<1x16x128xf32> to vector<1x16x128xbf16>
    %16 = vector.shape_cast %13 : vector<8x128xf32> to vector<1x8x128xf32>
    %17 = arith.truncf %16 : vector<1x8x128xf32> to vector<1x8x128xbf16>
    "tpu.trace_start"() <{level = 10 : i32, message = "bsa,bta->bst"}> : () -> ()
    %cst_14 = arith.constant dense<0.000000e+00> : vector<1x8x16xf32>
    %18 = tpu.matmul %17, %15, %cst_14 {dimension_numbers = #tpu.dot_dimension_numbers<[2], [2], [1], [1], [0, 0, 0, 1, 1, 1], [0], [0]>} : vector<1x8x128xbf16>, vector<1x16x128xbf16>, vector<1x8x16xf32> -> vector<1x8x16xf32>
    "tpu.trace_stop"() : () -> ()
    %cst_15 = arith.constant dense<0xFF800000> : vector<1x8xf32>
    %19 = vector.multi_reduction <maximumf>, %18, %cst_15 [2] : vector<1x8x16xf32> to vector<1x8xf32>
    %20 = vector.shape_cast %19 : vector<1x8xf32> to vector<1x8x1xf32>
    %21 = vector.broadcast %20 : vector<1x8x1xf32> to vector<1x8x16xf32>
    %22 = arith.subf %18, %21 : vector<1x8x16xf32>
    %23 = math.exp %22 : vector<1x8x16xf32>
    %cst_16 = arith.constant dense<0.000000e+00> : vector<1x8xf32>
    %24 = vector.multi_reduction <add>, %23, %cst_16 [2] : vector<1x8x16xf32> to vector<1x8xf32>
    %25 = vector.shape_cast %24 : vector<1x8xf32> to vector<1x8x1xf32>
    %26 = arith.truncf %23 : vector<1x8x16xf32> to vector<1x8x16xbf16>
    "tpu.trace_start"() <{level = 10 : i32, message = "bst,bth->bsh"}> : () -> ()
    %cst_17 = arith.constant dense<0.000000e+00> : vector<1x8x128xf32>
    %27 = tpu.matmul %26, %0, %cst_17 {dimension_numbers = #tpu.dot_dimension_numbers<[2], [1], [1], [2], [0, 0, 0, 1, 1, 2], [0], [0]>} : vector<1x8x16xbf16>, vector<1x16x128xbf16>, vector<1x8x128xf32> -> vector<1x8x128xf32>
    "tpu.trace_stop"() : () -> ()
    %28 = tpu.reciprocal %25 {approx = true} : vector<1x8x1xf32> -> vector<1x8x1xf32>
    %29 = vector.broadcast %28 : vector<1x8x1xf32> to vector<1x8x128xf32>
    %30 = arith.mulf %27, %29 : vector<1x8x128xf32>
    %c0_18 = arith.constant 0 : index
    %c0_19 = arith.constant 0 : index
    %c0_20 = arith.constant 0 : index
    %31 = vector.load %arg7[%c0_18, %c0_19, %c0_20] : memref<1x8x128xf32, #tpu.memory_space<vmem>>, vector<1x8x128xf32>
    tpu.vector_store %arg7[%c0_18, %c0_19, %c0_20], %30 {strides = array<i32>} : memref<1x8x128xf32, #tpu.memory_space<vmem>>, vector<1x8x128xf32>,
    return
  }
  func.func @transform_0(%arg0: i32) -> (i32, i32, i32) {
    %c0_i32 = arith.constant 0 : i32
    %c0_i32_0 = arith.constant 0 : i32
    %c0_i32_1 = arith.constant 0 : i32
    return %arg0, %c0_i32, %c0_i32_0 : i32, i32, i32
  }
  func.func @transform_1(%arg0: i32) -> (i32, i32, i32) {
    %c0_i32 = arith.constant 0 : i32
    %c0_i32_0 = arith.constant 0 : i32
    %c0_i32_1 = arith.constant 0 : i32
    return %arg0, %c0_i32, %c0_i32_0 : i32, i32, i32
  }
  func.func @transform_2(%arg0: i32) -> (i32, i32) {
    %c0_i32 = arith.constant 0 : i32
    %c0_i32_0 = arith.constant 0 : i32
    %c0_i32_1 = arith.constant 0 : i32
    return %c0_i32, %c0_i32_0 : i32, i32
  }
  func.func @transform_3(%arg0: i32) -> (i32, i32) {
    %c0_i32 = arith.constant 0 : i32
    %c0_i32_0 = arith.constant 0 : i32
    %c0_i32_1 = arith.constant 0 : i32
    return %c0_i32, %c0_i32_0 : i32, i32
  }
  func.func @transform_4(%arg0: i32) -> (i32, i32) {
    %c0_i32 = arith.constant 0 : i32
    %c0_i32_0 = arith.constant 0 : i32
    %c0_i32_1 = arith.constant 0 : i32
    return %c0_i32, %c0_i32_0 : i32, i32
  }
  func.func @transform_5(%arg0: i32) -> (i32, i32) {
    %c0_i32 = arith.constant 0 : i32
    %c0_i32_0 = arith.constant 0 : i32
    %c0_i32_1 = arith.constant 0 : i32
    return %c0_i32, %c0_i32_0 : i32, i32
  }
  func.func @transform_6(%arg0: i32) -> (i32, i32, i32) {
    %c0_i32 = arith.constant 0 : i32
    %c0_i32_0 = arith.constant 0 : i32
    %c0_i32_1 = arith.constant 0 : i32
    return %arg0, %c0_i32, %c0_i32_0 : i32, i32, i32
  }
}

</mosaic_0001>

<llo_original>
// kernel: tpu_custom_call.1
$region0: #{tpu_custom_call.1}
  #allocation0 [shape = 'u32[]', space=smem, size = 0x4, offset = 0x4, fixed_abs, tag = 'smem constant byte address 0x4 - core index']
  #allocation1 [shape = 'u32[144,128]{1,0:T(1,128)}', space=vmem, size = 0x12000, scoped, tag = 'internal scratch']
  %s0 = inlined_call_operand.hbm [shape: bf16[2,16,128], index: 0, kind: input, shape index: {}]
  %s1 = inlined_call_operand.hbm [shape: bf16[2,8,128], index: 1, kind: input, shape index: {}]
  %s2 = inlined_call_operand.hbm [shape: bf16[128,128], index: 2, kind: input, shape index: {}]
  %s3 = inlined_call_operand.vmem [shape: f32[1,128], index: 3, kind: input, shape index: {}]
  %s4 = inlined_call_operand.hbm [shape: bf16[128,128], index: 4, kind: input, shape index: {}]
  %s5 = inlined_call_operand.vmem [shape: f32[1,128], index: 5, kind: input, shape index: {}]
  %s6 = inlined_call_operand.hbm [shape: f32[2,8,128], index: 6, kind: output, shape index: {}]
  %s7 = sld [smem:[#allocation0]]
  $region73: #{tpu_custom_call.1} parent=0
    _
  %s9 = ssub.s32 1, %s7
  %s10 = scalar_select 0, %s9, %s7
  $region1: #{tpu_custom_call.1} parent=0
    #allocation2 [shape = 'u8[8192]{0}', space=vmem, size = 0x2000, scoped, tag = 'input window, operand 0']
    #allocation3 [shape = 's32[2]{0}', space=sflag, size = 0x8, scoped, tag = 'scoped memory for tpu_custom_call.1']
    #allocation4 [shape = 's32[2]{0}', space=sflag, size = 0x8, scoped, tag = 'scoped memory for tpu_custom_call.1']
    #allocation5 [shape = 'u8[4096]{0}', space=vmem, size = 0x1000, scoped, tag = 'input window, operand 1']
    #allocation6 [shape = 's32[2]{0}', space=sflag, size = 0x8, scoped, tag = 'scoped memory for tpu_custom_call.1']
    #allocation7 [shape = 'u8[32768]{0}', space=vmem, size = 0x8000, scoped, tag = 'input window, operand 2, single buffered']
    #allocation8 [shape = 'u8[32768]{0}', space=vmem, size = 0x8000, scoped, tag = 'input window, operand 4, single buffered']
    #allocation9 [shape = 's32[1]{0}', space=sflag, size = 0x4, scoped, tag = 'scoped memory for tpu_custom_call.1']
    #allocation10 [shape = 'u8[8192]{0}', space=vmem, size = 0x2000, scoped, tag = 'output window, operand 0']
    %11 = vsyncpa [#allocation3], 0
    %s12 = scalar_lea.sflag [#allocation3], 1
    %13 = vsyncpa %s12, 0
    %14 = vsyncpa [#allocation6], 0
    %s15 = scalar_lea.sflag [#allocation6], 1
    %16 = vsyncpa %s15, 0
    %17 = vsyncpa [#allocation9], 0
    %18 = vsyncpa [#allocation4], 0
    %s19 = scalar_lea.sflag [#allocation4], 1
    %20 = vsyncpa %s19, 0
    loop: start=0, step=1, limit=4
    $region2: #{tpu_custom_call.1} parent=1 // loop_pre_header
      _
    $region3: #{tpu_custom_call.1} parent=1 // loop_header
      %s22 = sphi 0, %s26
      %p23 = scmp.ge.s32.totalorder %s22, 4
      %s32 = sphi 0, %s34
      %s35 = sphi 0, %s32
      %s36 = sphi 0, %s35
      %s52 = sphi 0, %s36
      %s58 = sphi 0, %s60
      %s61 = sphi 0, %s58
      %s62 = sphi 0, %s61
      %s78 = sphi 0, %s62
      %s82 = sphi 0, %s82
      %s84 = sphi 0, %s82
      %s85 = sphi 0, %s84
      %s99 = sphi 0, %s85
      %s103 = sphi 0, %s103
      %s105 = sphi 0, %s103
      %s106 = sphi 0, %s105
      %s120 = sphi 0, %s106
      %s124 = sphi 0, %s124
      %s126 = sphi 0, %s124
      %s127 = sphi 0, %s126
      %s141 = sphi 0, %s127
      %s145 = sphi 0, %s145
      %s147 = sphi 0, %s145
      %s148 = sphi 0, %s147
      %s162 = sphi 0, %s148
      %s168 = sphi 0, %s170
      %s171 = sphi 0, %s168
      %s172 = sphi 0, %s171
      %s188 = sphi 0, %s172
    $region4: #{tpu_custom_call.1} parent=1 // loop_header_branch
      %25 = sbr.rel (%p23) target = $region8
    $region5: #{tpu_custom_call.1} parent=1 // loop_body
      %s27 = ssub.s32 %s22, 1
      %s28 = ssub.s32 %s22, 2
      %s29 = sadd.s32 %s22, 1
      %s30 = ssub.s32 %s22, %s29
      %p31 = scmp.eq.s32.totalorder %s30, 0
      %s33 = sadd.s32 %s32, 1
      %s34 = scalar_select %p31, %s32, %s33
      %p37 = pneg %p31
      %p38 = scmp.eq.s32.totalorder %s22, 1
      %p39 = por %p37, %p38
      %p40 = scmp.ne.s32.totalorder %s32, %s35
      %p41 = scmp.eq.s32.totalorder %s22, 0
      %p42 = por %p40, %p41
      %p43 = scmp.ne.s32.totalorder %s32, %s35
      %p44 = scmp.eq.s32.totalorder %s27, 1
      %p45 = por %p43, %p44
      %p46 = scmp.ne.s32.totalorder %s35, %s36
      %p47 = scmp.eq.s32.totalorder %s27, 0
      %p48 = por %p46, %p47
      %p49 = scmp.ne.s32.totalorder %s35, %s36
      %p50 = scmp.eq.s32.totalorder %s28, 1
      %p51 = por %p49, %p50
      %p53 = scmp.ne.s32.totalorder %s36, %s52
      %p54 = scmp.eq.s32.totalorder %s28, 0
      %p55 = por %p53, %p54
      %s56 = ssub.s32 %s22, %s29
      %p57 = scmp.eq.s32.totalorder %s56, 0
      %s59 = sadd.s32 %s58, 1
      %s60 = scalar_select %p57, %s58, %s59
      %p63 = pneg %p57
      %p64 = scmp.eq.s32.totalorder %s22, 1
      %p65 = por %p63, %p64
      %p66 = scmp.ne.s32.totalorder %s58, %s61
      %p67 = scmp.eq.s32.totalorder %s22, 0
      %p68 = por %p66, %p67
      %p69 = scmp.ne.s32.totalorder %s58, %s61
      %p70 = scmp.eq.s32.totalorder %s27, 1
      %p71 = por %p69, %p70
      %p72 = scmp.ne.s32.totalorder %s61, %s62
      %p73 = scmp.eq.s32.totalorder %s27, 0
      %p74 = por %p72, %p73
      %p75 = scmp.ne.s32.totalorder %s61, %s62
      %p76 = scmp.eq.s32.totalorder %s28, 1
      %p77 = por %p75, %p76
      %p79 = scmp.ne.s32.totalorder %s62, %s78
      %p80 = scmp.eq.s32.totalorder %s28, 0
      %p81 = por %p79, %p80
      %s83 = sadd.s32 %s82, 1
      %p86 = scmp.eq.s32.totalorder %s22, 1
      %p87 = scmp.ne.s32.totalorder %s82, %s84
      %p88 = scmp.eq.s32.totalorder %s22, 0
      %p89 = por %p87, %p88
      %p90 = scmp.ne.s32.totalorder %s82, %s84
      %p91 = scmp.eq.s32.totalorder %s27, 1
      %p92 = por %p90, %p91
      %p93 = scmp.ne.s32.totalorder %s84, %s85
      %p94 = scmp.eq.s32.totalorder %s27, 0
      %p95 = por %p93, %p94
      %p96 = scmp.ne.s32.totalorder %s84, %s85
      %p97 = scmp.eq.s32.totalorder %s28, 1
      %p98 = por %p96, %p97
      %p100 = scmp.ne.s32.totalorder %s85, %s99
      %p101 = scmp.eq.s32.totalorder %s28, 0
      %p102 = por %p100, %p101
      %s104 = sadd.s32 %s103, 1
      %p107 = scmp.eq.s32.totalorder %s22, 1
      %p108 = scmp.ne.s32.totalorder %s103, %s105
      %p109 = scmp.eq.s32.totalorder %s22, 0
      %p110 = por %p108, %p109
      %p111 = scmp.ne.s32.totalorder %s103, %s105
      %p112 = scmp.eq.s32.totalorder %s27, 1
      %p113 = por %p111, %p112
      %p114 = scmp.ne.s32.totalorder %s105, %s106
      %p115 = scmp.eq.s32.totalorder %s27, 0
      %p116 = por %p114, %p115
      %p117 = scmp.ne.s32.totalorder %s105, %s106
      %p118 = scmp.eq.s32.totalorder %s28, 1
      %p119 = por %p117, %p118
      %p121 = scmp.ne.s32.totalorder %s106, %s120
      %p122 = scmp.eq.s32.totalorder %s28, 0
      %p123 = por %p121, %p122
      %s125 = sadd.s32 %s124, 1
      %p128 = scmp.eq.s32.totalorder %s22, 1
      %p129 = scmp.ne.s32.totalorder %s124, %s126
      %p130 = scmp.eq.s32.totalorder %s22, 0
      %p131 = por %p129, %p130
      %p132 = scmp.ne.s32.totalorder %s124, %s126
      %p133 = scmp.eq.s32.totalorder %s27, 1
      %p134 = por %p132, %p133
      %p135 = scmp.ne.s32.totalorder %s126, %s127
      %p136 = scmp.eq.s32.totalorder %s27, 0
      %p137 = por %p135, %p136
      %p138 = scmp.ne.s32.totalorder %s126, %s127
      %p139 = scmp.eq.s32.totalorder %s28, 1
      %p140 = por %p138, %p139
      %p142 = scmp.ne.s32.totalorder %s127, %s141
      %p143 = scmp.eq.s32.totalorder %s28, 0
      %p144 = por %p142, %p143
      %s146 = sadd.s32 %s145, 1
      %p149 = scmp.eq.s32.totalorder %s22, 1
      %p150 = scmp.ne.s32.totalorder %s145, %s147
      %p151 = scmp.eq.s32.totalorder %s22, 0
      %p152 = por %p150, %p151
      %p153 = scmp.ne.s32.totalorder %s145, %s147
      %p154 = scmp.eq.s32.totalorder %s27, 1
      %p155 = por %p153, %p154
      %p156 = scmp.ne.s32.totalorder %s147, %s148
      %p157 = scmp.eq.s32.totalorder %s27, 0
      %p158 = por %p156, %p157
      %p159 = scmp.ne.s32.totalorder %s147, %s148
      %p160 = scmp.eq.s32.totalorder %s28, 1
      %p161 = por %p159, %p160
      %p163 = scmp.ne.s32.totalorder %s148, %s162
      %p164 = scmp.eq.s32.totalorder %s28, 0
      %p165 = por %p163, %p164
      %s166 = ssub.s32 %s22, %s29
      %p167 = scmp.eq.s32.totalorder %s166, 0
      %s169 = sadd.s32 %s168, 1
      %s170 = scalar_select %p167, %s168, %s169
      %p173 = pneg %p167
      %p174 = scmp.eq.s32.totalorder %s22, 1
      %p175 = por %p173, %p174
      %p176 = scmp.ne.s32.totalorder %s168, %s171
      %p177 = scmp.eq.s32.totalorder %s22, 0
      %p178 = por %p176, %p177
      %p179 = scmp.ne.s32.totalorder %s168, %s171
      %p180 = scmp.eq.s32.totalorder %s27, 1
      %p181 = por %p179, %p180
      %p182 = scmp.ne.s32.totalorder %s171, %s172
      %p183 = scmp.eq.s32.totalorder %s27, 0
      %p184 = por %p182, %p183
      %p185 = scmp.ne.s32.totalorder %s171, %s172
      %p186 = scmp.eq.s32.totalorder %s28, 1
      %p187 = por %p185, %p186
      %p189 = scmp.ne.s32.totalorder %s172, %s188
      %p190 = scmp.eq.s32.totalorder %s28, 0
      %p191 = por %p189, %p190
      %p192 = scmp.le.s32.totalorder 1, %s22
      %p193 = scmp.lt.s32.totalorder %s22, 3
      %p194 = pnand %p192, %p193
      %p195 = pneg %p194
      // Predicated region
      $region9: #{tpu_custom_call.1} parent=5 // pred_check
        _
      $region10: #{tpu_custom_call.1} parent=5 // pred_check_branch
        %197 = sbr.rel (%p194) target = $region12
      $region11: #{tpu_custom_call.1} parent=5 // pred_region
        %s198 = ssub.s32 %s22, 1
        // Predicated region
        $region13: #{tpu_custom_call.1} parent=11 // pred_check
          %p199 = pneg %p95
        $region14: #{tpu_custom_call.1} parent=11 // pred_check_branch
          %201 = sbr.rel (%p199) target = $region16
        $region15: #{tpu_custom_call.1} parent=11 // pred_region
          %s203 = ssub.s32 1024, 1024
          %204 = vsyncadd [#allocation6], %s203
          %s205 = sshll.u32 [#allocation7], 4
          %s206 = int_to_ptr.vmem [resolvable:$true] %s205
          %211 = dma.hbm_to_vmem [thread:$0]  %s2, 1024, %s206, [#allocation6], 64, 64, 4
        $region16: #{tpu_custom_call.1} parent=11 // pred_fallthru
          _
        // Predicated region
        $region17: #{tpu_custom_call.1} parent=11 // pred_check
          %p212 = pneg %p116
        $region18: #{tpu_custom_call.1} parent=11 // pred_check_branch
          %214 = sbr.rel (%p212) target = $region20
        $region19: #{tpu_custom_call.1} parent=11 // pred_region
          _
        $region20: #{tpu_custom_call.1} parent=11 // pred_fallthru
          _
        // Predicated region
        $region21: #{tpu_custom_call.1} parent=11 // pred_check
          %p215 = pneg %p137
        $region22: #{tpu_custom_call.1} parent=11 // pred_check_branch
          %217 = sbr.rel (%p215) target = $region24
        $region23: #{tpu_custom_call.1} parent=11 // pred_region
          %s219 = ssub.s32 1024, 1024
          %220 = vsyncadd [#allocation9], %s219
          %s221 = sshll.u32 [#allocation8], 4
          %s222 = int_to_ptr.vmem [resolvable:$true] %s221
          %227 = dma.hbm_to_vmem [thread:$0]  %s4, 1024, %s222, [#allocation9], 64, 64, 4
        $region24: #{tpu_custom_call.1} parent=11 // pred_fallthru
          _
        // Predicated region
        $region25: #{tpu_custom_call.1} parent=11 // pred_check
          %p228 = pneg %p158
        $region26: #{tpu_custom_call.1} parent=11 // pred_check_branch
          %230 = sbr.rel (%p228) target = $region28
        $region27: #{tpu_custom_call.1} parent=11 // pred_region
          _
        $region28: #{tpu_custom_call.1} parent=11 // pred_fallthru
          _
      $region12: #{tpu_custom_call.1} parent=5 // pred_fallthru
        _
      %p231 = scmp.lt.s32.totalorder %s22, 2
      // Predicated region
      $region29: #{tpu_custom_call.1} parent=5 // pred_check
        %p232 = pneg %p231
      $region30: #{tpu_custom_call.1} parent=5 // pred_check_branch
        %234 = sbr.rel (%p232) target = $region32
      $region31: #{tpu_custom_call.1} parent=5 // pred_region
        // Predicated region
        $region33: #{tpu_custom_call.1} parent=31 // pred_check
          %p235 = pneg %p42
        $region34: #{tpu_custom_call.1} parent=31 // pred_check_branch
          %237 = sbr.rel (%p235) target = $region36
        $region35: #{tpu_custom_call.1} parent=31 // pred_region
          %s238 = sand.u32 %s32, 1
          %s239 = scalar_lea.sflag [#allocation3], %s238
          %s240 = sand.u32 %s32, 1
          %s241 = smul.addr %s240, 8
          %s242 = scalar_lea.vmem [#allocation2], %s241
          %s244 = ssub.s32 128, 128
          %245 = vsyncadd %s239, %s244
          %s246 = smul.addr %s22, 2
          %s247 = smul.addr %s246, 64
          %s248 = scalar_lea.hbm %s0, %s247
          %s249 = sshll.u32 %s242, 4
          %s250 = int_to_ptr.vmem [resolvable:$true] %s249
          %255 = dma.hbm_to_vmem [thread:$0]  %s248, 128, %s250, %s239, 64, 64, 4
        $region36: #{tpu_custom_call.1} parent=31 // pred_fallthru
          _
        // Predicated region
        $region37: #{tpu_custom_call.1} parent=31 // pred_check
          %p256 = pneg %p68
        $region38: #{tpu_custom_call.1} parent=31 // pred_check_branch
          %258 = sbr.rel (%p256) target = $region40
        $region39: #{tpu_custom_call.1} parent=31 // pred_region
          %s259 = sand.u32 %s22, 1
          %s260 = scalar_lea.sflag [#allocation6], %s259
          %s261 = sand.u32 %s58, 1
          %s262 = smul.addr %s261, 4
          %s263 = scalar_lea.vmem [#allocation5], %s262
          %s265 = ssub.s32 64, 64
          %266 = vsyncadd %s260, %s265
          %s267 = smul.addr %s22, 64
          %s268 = scalar_lea.hbm %s1, %s267
          %s270 = sshll.u32 %s263, 4
          %s271 = int_to_ptr.vmem [resolvable:$true] %s270
          %273 = dma.hbm_to_vmem [thread:$0]  %s268, 64, %s271, %s260
        $region40: #{tpu_custom_call.1} parent=31 // pred_fallthru
          _
      $region32: #{tpu_custom_call.1} parent=5 // pred_fallthru
        _
      %p274 = scmp.le.s32.totalorder 1, %s22
      %p275 = scmp.lt.s32.totalorder %s22, 3
      %p276 = pnand %p274, %p275
      %p277 = pneg %p276
      // Predicated region
      $region41: #{tpu_custom_call.1} parent=5 // pred_check
        _
      $region42: #{tpu_custom_call.1} parent=5 // pred_check_branch
        %279 = sbr.rel (%p276) target = $region44
      $region43: #{tpu_custom_call.1} parent=5 // pred_region
        %s280 = ssub.s32 %s22, 1
        %s281 = sand.u32 %s35, 1
        %s282 = scalar_lea.sflag [#allocation3], %s281
        %s283 = sand.u32 %s35, 1
        %s284 = smul.addr %s283, 8
        %s285 = scalar_lea.vmem [#allocation2], %s284
        // Predicated region
        $region45: #{tpu_custom_call.1} parent=43 // pred_check
          %p286 = pneg %p48
        $region46: #{tpu_custom_call.1} parent=43 // pred_check_branch
          %288 = sbr.rel (%p286) target = $region48
        $region47: #{tpu_custom_call.1} parent=43 // pred_region
          %289 = dma.done %s282, 128
        $region48: #{tpu_custom_call.1} parent=43 // pred_fallthru
          _
        %s290 = sand.u32 %s27, 1
        %s291 = scalar_lea.sflag [#allocation6], %s290
        %s292 = sand.u32 %s61, 1
        %s293 = smul.addr %s292, 4
        %s294 = scalar_lea.vmem [#allocation5], %s293
        // Predicated region
        $region49: #{tpu_custom_call.1} parent=43 // pred_check
          %p295 = pneg %p74
        $region50: #{tpu_custom_call.1} parent=43 // pred_check_branch
          %297 = sbr.rel (%p295) target = $region52
        $region51: #{tpu_custom_call.1} parent=43 // pred_region
          %298 = dma.done %s291, 64
        $region52: #{tpu_custom_call.1} parent=43 // pred_fallthru
          _
        // Predicated region
        $region53: #{tpu_custom_call.1} parent=43 // pred_check
          %p299 = pneg %p95
        $region54: #{tpu_custom_call.1} parent=43 // pred_check_branch
          %301 = sbr.rel (%p299) target = $region56
        $region55: #{tpu_custom_call.1} parent=43 // pred_region
          %302 = dma.done [#allocation6], 1024
        $region56: #{tpu_custom_call.1} parent=43 // pred_fallthru
          _
        // Predicated region
        $region57: #{tpu_custom_call.1} parent=43 // pred_check
          %p303 = pneg %p137
        $region58: #{tpu_custom_call.1} parent=43 // pred_check_branch
          %305 = sbr.rel (%p303) target = $region60
        $region59: #{tpu_custom_call.1} parent=43 // pred_region
          %306 = dma.done [#allocation9], 1024
        $region60: #{tpu_custom_call.1} parent=43 // pred_fallthru
          _
        %s307 = sand.u32 %s35, 1
        %s308 = scalar_lea.sflag [#allocation3], %s307
        %s309 = sand.u32 %s35, 1
        %s310 = smul.addr %s309, 8
        %s311 = scalar_lea.vmem [#allocation2], %s310
        %p312 = pneg %p48
        %p313 = pneg %p45
        %s314 = sand.u32 %s27, 1
        %s315 = scalar_lea.sflag [#allocation6], %s314
        %s316 = sand.u32 %s61, 1
        %s317 = smul.addr %s316, 4
        %s318 = scalar_lea.vmem [#allocation5], %s317
        %p319 = pneg %p74
        %p320 = pneg %p71
        %p321 = pneg %p95
        %p322 = pneg %p92
        %p323 = pneg %p116
        %p324 = pneg %p113
        %p325 = pneg %p137
        %p326 = pneg %p134
        %p327 = pneg %p158
        %p328 = pneg %p155
        %p329 = pneg %p184
        %p330 = pneg %p181
        %s331 = sand.u32 %s171, 1
        %s332 = scalar_lea.sflag [#allocation4], %s331
        %s333 = sand.u32 %s171, 1
        %s334 = smul.addr %s333, 8
        %s335 = scalar_lea.vmem [#allocation10], %s334
        %v337 = vld [vmem:[%s285] sm:$0xf]
        %v338 = vld [vmem:[%s285 + $0x4] sm:$0xf]
        %v339 = vld [vmem:[%s294] sm:$0xf]
        %v340 = vld [vmem:[#allocation7] sm:$0xf]
        %v341 = vld [vmem:[#allocation7 + $0x4] sm:$0xf]
        %v342 = vld [vmem:[#allocation7 + $0x8] sm:$0xf]
        %v343 = vld [vmem:[#allocation7 + $0xc] sm:$0xf]
        %v344 = vld [vmem:[#allocation7 + $0x10] sm:$0xf]
        %v345 = vld [vmem:[#allocation7 + $0x14] sm:$0xf]
        %v346 = vld [vmem:[#allocation7 + $0x18] sm:$0xf]
        %v347 = vld [vmem:[#allocation7 + $0x1c] sm:$0xf]
        %v348 = vld [vmem:[#allocation7 + $0x20] sm:$0xf]
        %v349 = vld [vmem:[#allocation7 + $0x24] sm:$0xf]
        %v350 = vld [vmem:[#allocation7 + $0x28] sm:$0xf]
        %v351 = vld [vmem:[#allocation7 + $0x2c] sm:$0xf]
        %v352 = vld [vmem:[#allocation7 + $0x30] sm:$0xf]
        %v353 = vld [vmem:[#allocation7 + $0x34] sm:$0xf]
        %v354 = vld [vmem:[#allocation7 + $0x38] sm:$0xf]
        %v355 = vld [vmem:[#allocation7 + $0x3c] sm:$0xf]
        %v356 = vld [vmem:[#allocation8] sm:$0xf]
        %v357 = vld [vmem:[#allocation8 + $0x4] sm:$0xf]
        %v358 = vld [vmem:[#allocation8 + $0x8] sm:$0xf]
        %v359 = vld [vmem:[#allocation8 + $0xc] sm:$0xf]
        %v360 = vld [vmem:[#allocation8 + $0x10] sm:$0xf]
        %v361 = vld [vmem:[#allocation8 + $0x14] sm:$0xf]
        %v362 = vld [vmem:[#allocation8 + $0x18] sm:$0xf]
        %v363 = vld [vmem:[#allocation8 + $0x1c] sm:$0xf]
        %v364 = vld [vmem:[#allocation8 + $0x20] sm:$0xf]
        %v365 = vld [vmem:[#allocation8 + $0x24] sm:$0xf]
        %v366 = vld [vmem:[#allocation8 + $0x28] sm:$0xf]
        %v367 = vld [vmem:[#allocation8 + $0x2c] sm:$0xf]
        %v368 = vld [vmem:[#allocation8 + $0x30] sm:$0xf]
        %v369 = vld [vmem:[#allocation8 + $0x34] sm:$0xf]
        %v370 = vld [vmem:[#allocation8 + $0x38] sm:$0xf]
        %v371 = vld [vmem:[#allocation8 + $0x3c] sm:$0xf]
        %v372 = vld [vmem:[%s3] sm:$0x1]
        %v373 = vld [vmem:[%s5] sm:$0x1]
        %v375 = vlaneseq
        %v376 = vshrl.u32 %v375, 7
        %v377 = vsub.s32 0, %v376
        %v378 = vrot.slane %v372, %v377
        %v382 = vunpack.c.l.b16 %v337
        %v383 = vunpack.c.l.b16 %v338
        %v384 = vpack.c.b16 %v383, %v382
        %v402 = vunpack.c.l.b16 %v340
        %v403 = vunpack.c.l.b16 %v341
        %v404 = vunpack.c.l.b16 %v342
        %v405 = vunpack.c.l.b16 %v343
        %v406 = vunpack.c.l.b16 %v344
        %v407 = vunpack.c.l.b16 %v345
        %v408 = vunpack.c.l.b16 %v346
        %v409 = vunpack.c.l.b16 %v347
        %v410 = vunpack.c.l.b16 %v348
        %v411 = vunpack.c.l.b16 %v349
        %v412 = vunpack.c.l.b16 %v350
        %v413 = vunpack.c.l.b16 %v351
        %v414 = vunpack.c.l.b16 %v352
        %v415 = vunpack.c.l.b16 %v353
        %v416 = vunpack.c.l.b16 %v354
        %v417 = vunpack.c.l.b16 %v355
        %v418 = vpack.c.b16 %v403, %v402
        %v419 = vpack.c.b16 %v405, %v404
        %v420 = vpack.c.b16 %v407, %v406
        %v421 = vpack.c.b16 %v409, %v408
        %v422 = vpack.c.b16 %v411, %v410
        %v423 = vpack.c.b16 %v413, %v412
        %v424 = vpack.c.b16 %v415, %v414
        %v425 = vpack.c.b16 %v417, %v416
        %434 = vmatprep.subr.bf16.mxu0 0
        %435 = vmatpush1.bf16.msra.mxu0 %v418
        %436 = vmatprep.subr.bf16.mxu0 0
        %437 = vmatpush1.bf16.msra.mxu0 %v419
        %438 = vmatprep.subr.bf16.mxu0 0
        %439 = vmatpush1.bf16.msra.mxu0 %v420
        %440 = vmatprep.subr.bf16.mxu0 0
        %441 = vmatpush1.bf16.msra.mxu0 %v421
        %442 = vmatprep.subr.bf16.mxu0 0
        %443 = vmatpush1.bf16.msra.mxu0 %v422
        %444 = vmatprep.subr.bf16.mxu0 0
        %445 = vmatpush1.bf16.msra.mxu0 %v423
        %446 = vmatprep.subr.bf16.mxu0 0
        %447 = vmatpush1.bf16.msra.mxu0 %v424
        %448 = vmatprep.subr.bf16.mxu0 0
        %449 = vmatpush1.bf16.msra.mxu0 %v425
        %450 = vmatprep.subr.bf16.mxu0 0
        %451 = vmatpush1.bf16.msra.mxu0 0
        %452 = vmatprep.subr.bf16.mxu0 0
        %453 = vmatpush1.bf16.msra.mxu0 0
        %454 = vmatprep.subr.bf16.mxu0 0
        %455 = vmatpush1.bf16.msra.mxu0 0
        %456 = vmatprep.subr.bf16.mxu0 0
        %457 = vmatpush1.bf16.msra.mxu0 0
        %458 = vmatprep.subr.bf16.mxu0 0
        %459 = vmatpush1.bf16.msra.mxu0 0
        %460 = vmatprep.subr.bf16.mxu0 0
        %461 = vmatpush1.bf16.msra.mxu0 0
        %462 = vmatprep.subr.bf16.mxu0 0
        %463 = vmatpush1.bf16.msra.mxu0 0
        %464 = vmatprep.subr.bf16.mxu0 0
        %465 = vmatpush1.bf16.msra.mxu0 0
        %466 = vmatprep.mubr.bf16.mxu0 0
        %467 = vmatmul.mubr.bf16.gmra.mrb[0].mxu0 %v384
        %v468 = vpop.f32.mrb[0].mxu0
        %v469 = vadd.f32 %v378, %v468
        %v470 = vpop.f32.mrb[0].mxu0
        %v471 = vpop.f32.mrb[0].mxu0
        %v472 = vadd.f32 %v378, %v471
        %v473 = vpop.f32.mrb[0].mxu0
        %474 = vdwg.mxu0
        %v476 = vlaneseq
        %v477 = vshrl.u32 %v476, 7
        %v478 = vsub.s32 0, %v477
        %v479 = vrot.slane %v373, %v478
        %v497 = vunpack.c.l.b16 %v356
        %v498 = vunpack.c.l.b16 %v357
        %v499 = vunpack.c.l.b16 %v358
        %v500 = vunpack.c.l.b16 %v359
        %v501 = vunpack.c.l.b16 %v360
        %v502 = vunpack.c.l.b16 %v361
        %v503 = vunpack.c.l.b16 %v362
        %v504 = vunpack.c.l.b16 %v363
        %v505 = vunpack.c.l.b16 %v364
        %v506 = vunpack.c.l.b16 %v365
        %v507 = vunpack.c.l.b16 %v366
        %v508 = vunpack.c.l.b16 %v367
        %v509 = vunpack.c.l.b16 %v368
        %v510 = vunpack.c.l.b16 %v369
        %v511 = vunpack.c.l.b16 %v370
        %v512 = vunpack.c.l.b16 %v371
        %v513 = vpack.c.b16 %v498, %v497
        %v514 = vpack.c.b16 %v500, %v499
        %v515 = vpack.c.b16 %v502, %v501
        %v516 = vpack.c.b16 %v504, %v503
        %v517 = vpack.c.b16 %v506, %v505
        %v518 = vpack.c.b16 %v508, %v507
        %v519 = vpack.c.b16 %v510, %v509
        %v520 = vpack.c.b16 %v512, %v511
        %529 = vmatprep.subr.bf16.mxu0 0
        %530 = vmatpush1.bf16.msra.mxu0 %v513
        %531 = vmatprep.subr.bf16.mxu0 0
        %532 = vmatpush1.bf16.msra.mxu0 %v514
        %533 = vmatprep.subr.bf16.mxu0 0
        %534 = vmatpush1.bf16.msra.mxu0 %v515
        %535 = vmatprep.subr.bf16.mxu0 0
        %536 = vmatpush1.bf16.msra.mxu0 %v516
        %537 = vmatprep.subr.bf16.mxu0 0
        %538 = vmatpush1.bf16.msra.mxu0 %v517
        %539 = vmatprep.subr.bf16.mxu0 0
        %540 = vmatpush1.bf16.msra.mxu0 %v518
        %541 = vmatprep.subr.bf16.mxu0 0
        %542 = vmatpush1.bf16.msra.mxu0 %v519
        %543 = vmatprep.subr.bf16.mxu0 0
        %544 = vmatpush1.bf16.msra.mxu0 %v520
        %545 = vmatprep.subr.bf16.mxu0 0
        %546 = vmatpush1.bf16.msra.mxu0 0
        %547 = vmatprep.subr.bf16.mxu0 0
        %548 = vmatpush1.bf16.msra.mxu0 0
        %549 = vmatprep.subr.bf16.mxu0 0
        %550 = vmatpush1.bf16.msra.mxu0 0
        %551 = vmatprep.subr.bf16.mxu0 0
        %552 = vmatpush1.bf16.msra.mxu0 0
        %553 = vmatprep.subr.bf16.mxu0 0
        %554 = vmatpush1.bf16.msra.mxu0 0
        %555 = vmatprep.subr.bf16.mxu0 0
        %556 = vmatpush1.bf16.msra.mxu0 0
        %557 = vmatprep.subr.bf16.mxu0 0
        %558 = vmatpush1.bf16.msra.mxu0 0
        %559 = vmatprep.subr.bf16.mxu0 0
        %560 = vmatpush1.bf16.msra.mxu0 0
        %561 = vmatprep.mubr.bf16.mxu0 0
        %562 = vmatmul.mubr.bf16.gmra.mrb[0].mxu0 %v339
        %v563 = vpop.f32.mrb[0].mxu0
        %v564 = vadd.f32 %v479, %v563
        %v565 = vpop.f32.mrb[0].mxu0
        %v566 = vpop.f32.mrb[0].mxu0
        %v567 = vpop.f32.mrb[0].mxu0
        %568 = vdwg.mxu0
        %v569 = vpack.c.bf16 %v472, %v469
        %v570 = vpack.c.bf16 %v564, %v564
        %571 = vmatprep.subr.bf16.mxu0 0
        %572 = vmatpush1.bf16.xpose.msra.mxu0 %v569
        %573 = vmatprep.subr.bf16.mxu0 0
        %574 = vmatpush1.bf16.xpose.msra.mxu0 0
        %575 = vmatprep.subr.bf16.mxu0 0
        %576 = vmatpush1.bf16.xpose.msra.mxu0 0
        %577 = vmatprep.subr.bf16.mxu0 0
        %578 = vmatpush1.bf16.xpose.msra.mxu0 0
        %579 = vmatprep.subr.bf16.mxu0 0
        %580 = vmatpush1.bf16.xpose.msra.mxu0 0
        %581 = vmatprep.subr.bf16.mxu0 0
        %582 = vmatpush1.bf16.xpose.msra.mxu0 0
        %583 = vmatprep.subr.bf16.mxu0 0
        %584 = vmatpush1.bf16.xpose.msra.mxu0 0
        %585 = vmatprep.subr.bf16.mxu0 0
        %586 = vmatpush1.bf16.xpose.msra.mxu0 0
        %587 = vmatprep.subr.bf16.mxu0 0
        %588 = vmatpush1.bf16.xpose.msra.mxu0 0
        %589 = vmatprep.subr.bf16.mxu0 0
        %590 = vmatpush1.bf16.xpose.msra.mxu0 0
        %591 = vmatprep.subr.bf16.mxu0 0
        %592 = vmatpush1.bf16.xpose.msra.mxu0 0
        %593 = vmatprep.subr.bf16.mxu0 0
        %594 = vmatpush1.bf16.xpose.msra.mxu0 0
        %595 = vmatprep.subr.bf16.mxu0 0
        %596 = vmatpush1.bf16.xpose.msra.mxu0 0
        %597 = vmatprep.subr.bf16.mxu0 0
        %598 = vmatpush1.bf16.xpose.msra.mxu0 0
        %599 = vmatprep.subr.bf16.mxu0 0
        %600 = vmatpush1.bf16.xpose.msra.mxu0 0
        %601 = vmatprep.subr.bf16.mxu0 0
        %602 = vmatpush1.bf16.xpose.msra.mxu0 0
        %603 = vmatprep.mubr.bf16.mxu0 0
        %604 = vmatmul.mubr.bf16.gmra.mrb[0].mxu0 %v570
        %v605 = vpop.f32.mrb[0].mxu0
        %v606 = vadd.f32 0.0, %v605
        %v607 = vpop.f32.mrb[0].mxu0
        %v608 = vpop.f32.mrb[0].mxu0
        %v609 = vpop.f32.mrb[0].mxu0
        %610 = vdwg.mxu0
        %vm611 = vcmask 130048
        %v612 = vsel %vm611, %v606, -inf
        %613 = vmax.xlane.f32.xlu0 %v612
        %v614 = vpop.xlane.xlu0 %613
        %v615 = vsub.f32 %v606, %v614
        %v616 = vmul.f32 %v615, 1.442695
        %v617 = vpow.pop %v616
        %v618 = vsel %vm611, %v617, 0.0
        %619 = vadd.xlane.f32.xlu0 %v618
        %v620 = vpop.xlane.xlu0 %619
        %v621 = vpack.c.bf16 %v617, %v617
        %v623 = vsel %vm611, %v621, 0
        %625 = vmatprep.subr.bf16.mxu0 0
        %626 = vmatpush1.bf16.msra.mxu0 %v384
        %627 = vmatprep.subr.bf16.mxu0 0
        %628 = vmatpush1.bf16.msra.mxu0 0
        %629 = vmatprep.subr.bf16.mxu0 0
        %630 = vmatpush1.bf16.msra.mxu0 0
        %631 = vmatprep.subr.bf16.mxu0 0
        %632 = vmatpush1.bf16.msra.mxu0 0
        %633 = vmatprep.subr.bf16.mxu0 0
        %634 = vmatpush1.bf16.msra.mxu0 0
        %635 = vmatprep.subr.bf16.mxu0 0
        %636 = vmatpush1.bf16.msra.mxu0 0
        %637 = vmatprep.subr.bf16.mxu0 0
        %638 = vmatpush1.bf16.msra.mxu0 0
        %639 = vmatprep.subr.bf16.mxu0 0
        %640 = vmatpush1.bf16.msra.mxu0 0
        %641 = vmatprep.subr.bf16.mxu0 0
        %642 = vmatpush1.bf16.msra.mxu0 0
        %643 = vmatprep.subr.bf16.mxu0 0
        %644 = vmatpush1.bf16.msra.mxu0 0
        %645 = vmatprep.subr.bf16.mxu0 0
        %646 = vmatpush1.bf16.msra.mxu0 0
        %647 = vmatprep.subr.bf16.mxu0 0
        %648 = vmatpush1.bf16.msra.mxu0 0
        %649 = vmatprep.subr.bf16.mxu0 0
        %650 = vmatpush1.bf16.msra.mxu0 0
        %651 = vmatprep.subr.bf16.mxu0 0
        %652 = vmatpush1.bf16.msra.mxu0 0
        %653 = vmatprep.subr.bf16.mxu0 0
        %654 = vmatpush1.bf16.msra.mxu0 0
        %655 = vmatprep.subr.bf16.mxu0 0
        %656 = vmatpush1.bf16.msra.mxu0 0
        %657 = vmatprep.mubr.bf16.mxu0 0
        %658 = vmatmul.mubr.bf16.gmra.mrb[0].mxu0 %v623
        %v659 = vpop.f32.mrb[0].mxu0
        %v660 = vadd.f32 0.0, %v659
        %v661 = vpop.f32.mrb[0].mxu0
        %v662 = vpop.f32.mrb[0].mxu0
        %v663 = vpop.f32.mrb[0].mxu0
        %664 = vdwg.mxu0
        %v665 = vrcp.pop %v620
        %v666 = vmul.f32 %v660, %v665
        %667 = vst [vmem:[%s335] sm:$0xff] %v666
        %s668 = sand.u32 %s171, 1
        %s669 = scalar_lea.sflag [#allocation4], %s668
        %s670 = sand.u32 %s171, 1
        %s671 = smul.addr %s670, 8
        %s672 = scalar_lea.vmem [#allocation10], %s671
        // Predicated region
        $region61: #{tpu_custom_call.1} parent=43 // pred_check
          %p673 = pneg %p181
        $region62: #{tpu_custom_call.1} parent=43 // pred_check_branch
          %675 = sbr.rel (%p673) target = $region64
        $region63: #{tpu_custom_call.1} parent=43 // pred_region
          %s677 = ssub.s32 128, 128
          %678 = vsyncadd %s669, %s677
          %s679 = smul.addr %s27, 128
          %s680 = scalar_lea.hbm %s6, %s679
          %s682 = sshll.u32 %s672, 4
          %s683 = int_to_ptr.vmem [resolvable:$true] %s682
          %685 = dma.vmem_to_hbm [thread:$0]  %s683, 128, %s680, %s669
        $region64: #{tpu_custom_call.1} parent=43 // pred_fallthru
          _
      $region44: #{tpu_custom_call.1} parent=5 // pred_fallthru
        _
      %p686 = scmp.le.s32.totalorder 2, %s22
      // Predicated region
      $region65: #{tpu_custom_call.1} parent=5 // pred_check
        %p687 = pneg %p686
      $region66: #{tpu_custom_call.1} parent=5 // pred_check_branch
        %689 = sbr.rel (%p687) target = $region68
      $region67: #{tpu_custom_call.1} parent=5 // pred_region
        %s690 = ssub.s32 %s22, 2
        // Predicated region
        $region69: #{tpu_custom_call.1} parent=67 // pred_check
          %p691 = pneg %p187
        $region70: #{tpu_custom_call.1} parent=67 // pred_check_branch
          %693 = sbr.rel (%p691) target = $region72
        $region71: #{tpu_custom_call.1} parent=67 // pred_region
          %s694 = sand.u32 %s172, 1
          %s695 = scalar_lea.sflag [#allocation4], %s694
          %s696 = sand.u32 %s172, 1
          %s697 = smul.addr %s696, 8
          %s698 = scalar_lea.vmem [#allocation10], %s697
          %699 = dma.done %s695, 128
        $region72: #{tpu_custom_call.1} parent=67 // pred_fallthru
          _
      $region68: #{tpu_custom_call.1} parent=5 // pred_fallthru
        _
    $region6: #{tpu_custom_call.1} parent=1 // loop_footer
      %s26 = sadd.s32 1, %s22
    $region7: #{tpu_custom_call.1} parent=1 // loop_footer_branch
      %21 = sbr.rel target = $region3
    $region8: #{tpu_custom_call.1} parent=1 // loop_exit
      _
    %700 = vsyncpa [#allocation3], 1
    %s701 = scalar_lea.sflag [#allocation3], 1
    %702 = vsyncpa %s701, 1
    %703 = vsyncpa [#allocation6], 1
    %s704 = scalar_lea.sflag [#allocation6], 1
    %705 = vsyncpa %s704, 1
    %706 = vsyncpa [#allocation9], 1
    %707 = vsyncpa [#allocation4], 1
    %s708 = scalar_lea.sflag [#allocation4], 1
    %709 = vsyncpa %s708, 1

</llo_original>
